<compile_context>
chip_gen: v7x
topology: tpu7x:2x2x1
jax: 0.10.0
libtpu: 0.0.40
codegen_flags: <defaults>
</compile_context>

<pallas_src>
import functools
import math

import jax
import jax.numpy as jnp
from jax.experimental import pallas as pl
from jax.experimental.pallas import tpu as pltpu


# ----------------------------- Pallas kernel --------------------------------

def token_type_embedding_kernel(ids_ref, table_ref, out_ref, *, n_padded, scale):
    # ids_ref:   (bm, 1)        int32   token-type ids for this row tile
    # table_ref: (n_padded, D)  float32 embedding table (vocab padded to 8k rows)
    # out_ref:   (bm, D)        float32 scaled embeddings
    ids = ids_ref[...]                                           # (bm, 1)
    bm = ids.shape[0]
    col = jax.lax.broadcasted_iota(jnp.int32, (bm, n_padded), 1)  # (bm, n_padded)
    # One-hot selector with sqrt(d_model) folded in (exact in fp32: the dot
    # contributes a single nonzero term scale * table[id]).
    onehot = jnp.where(col == ids, scale, 0.0).astype(jnp.float32)
    table = table_ref[...].astype(jnp.float32)
    out = jnp.dot(onehot, table, preferred_element_type=jnp.float32)
    out_ref[...] = out.astype(out_ref.dtype)


# ------------------------------ wrapper --------------------------------------

def token_type_embedding(ids, table, *, block_rows=1024):
    """ids: (B, S) integer token-type ids; table: (n_token_type, d_model).

    Returns (B, S, d_model) = table[ids] * sqrt(d_model).
    """
    B, S = ids.shape
    n_tt, D = table.shape
    N = B * S
    scale = math.sqrt(D)

    # Pad the vocab axis to a sublane multiple so the one-hot matmul has an
    # aligned contraction dim; padded rows are zeros and never selected.
    n_padded = max(8, ((n_tt + 7) // 8) * 8)
    table_p = jnp.pad(table, ((0, n_padded - n_tt), (0, 0)))

    ids2d = ids.reshape(N, 1).astype(jnp.int32)

    # Row-tile the flattened (B*S) axis.  At toy sizes this is one block; at
    # large sizes the "parallel" grid lets v7x's 2 TensorCores split the rows.
    bm = N if N <= block_rows else block_rows
    if N % bm != 0:
        bm = N  # fall back to a single full block for ragged sizes
    grid = (N // bm,)

    kernel = functools.partial(
        token_type_embedding_kernel, n_padded=n_padded, scale=scale
    )

    out = pl.pallas_call(
        kernel,
        grid_spec=pltpu.PrefetchScalarGridSpec(
            num_scalar_prefetch=0,
            grid=grid,
            in_specs=[
                pl.BlockSpec((bm, 1), lambda i: (i, 0)),          # ids tile
                pl.BlockSpec((n_padded, D), lambda i: (0, 0)),    # full table
            ],
            out_specs=pl.BlockSpec((bm, D), lambda i: (i, 0)),    # lane-dense
        ),
        out_shape=jax.ShapeDtypeStruct((N, D), table.dtype),
        compiler_params=pltpu.CompilerParams(
            dimension_semantics=("parallel",),
        ),
    )(ids2d, table_p)

    return out.reshape(B, S, D)


# ------------------------------------ main ------------------------------------

if __name__ == "__main__":
    # config: n_token_type=4, d_model=128 (lane-dense); inputs: batch=2, seq=8
    B, S, N_TOKEN_TYPE, D_MODEL = 2, 8, 4, 128

    key = jax.random.PRNGKey(0)
    k_ids, k_tab = jax.random.split(key)
    token_type_ids = jax.random.randint(
        k_ids, (B, S), 0, N_TOKEN_TYPE, dtype=jnp.int32
    )
    table = 0.02 * jax.random.normal(k_tab, (N_TOKEN_TYPE, D_MODEL), jnp.float32)

    out = token_type_embedding(token_type_ids, table)
    jax.block_until_ready(out)

    # reference: plain JAX gather * sqrt(d_model)
    ref = table[token_type_ids] * math.sqrt(D_MODEL)
    assert out.shape == (B, S, D_MODEL)
    assert jnp.allclose(out, ref, atol=1e-5, rtol=1e-5)
    print("KERNEL_OK")
</pallas_src>

<mosaic_0001>
module attributes {stable_mosaic.version = 11 : i64} {
  func.func @token_type_embedding_kernel(%arg0: i32, %arg1: memref<16x1xi32, #tpu.memory_space<vmem>>, %arg2: memref<8x128xf32, #tpu.memory_space<vmem>>, %arg3: memref<16x128xf32, #tpu.memory_space<vmem>>) attributes {dimension_semantics = [#tpu.dimension_semantics<parallel>], iteration_bounds = array<i64: 1>, scalar_prefetch = 0 : i64, scratch_operands = 0 : i64, tpu.core_type = #tpu.core_type<tc>, window_params = [{transform_indices = @transform_0, window_bounds = array<i64: 16, 1>}, {pipeline_mode = #tpu.pipeline_mode<synchronous>, transform_indices = @transform_1, window_bounds = array<i64: 8, 128>}, {transform_indices = @transform_2, window_bounds = array<i64: 16, 128>}]} {
    %c0 = arith.constant 0 : index
    %c0_0 = arith.constant 0 : index
    %0 = vector.load %arg1[%c0, %c0_0] : memref<16x1xi32, #tpu.memory_space<vmem>>, vector<16x1xi32>
    %1 = tpu.iota {dimensions = array<i32: 1>} : vector<16x8xi32>
    %2 = vector.broadcast %0 : vector<16x1xi32> to vector<16x8xi32>
    %3 = arith.cmpi eq, %1, %2 : vector<16x8xi32>
    %cst = arith.constant 11.3137083 : f32
    %cst_1 = arith.constant 0.000000e+00 : f32
    %4 = vector.broadcast %cst : f32 to vector<16x8xf32>
    %5 = vector.broadcast %cst_1 : f32 to vector<16x8xf32>
    %6 = arith.select %3, %4, %5 : vector<16x8xi1>, vector<16x8xf32>
    %c0_2 = arith.constant 0 : index
    %c0_3 = arith.constant 0 : index
    %7 = vector.load %arg2[%c0_2, %c0_3] : memref<8x128xf32, #tpu.memory_space<vmem>>, vector<8x128xf32>
    %cst_4 = arith.constant dense<0.000000e+00> : vector<16x128xf32>
    %8 = tpu.matmul %6, %7, %cst_4 {dimension_numbers = #tpu.dot_dimension_numbers<[1], [0], [0], [1], [0, 0, 1, 1], [], []>} : vector<16x8xf32>, vector<8x128xf32>, vector<16x128xf32> -> vector<16x128xf32>
    %c0_5 = arith.constant 0 : index
    %c0_6 = arith.constant 0 : index
    %9 = vector.load %arg3[%c0_5, %c0_6] : memref<16x128xf32, #tpu.memory_space<vmem>>, vector<16x128xf32>
    tpu.vector_store %arg3[%c0_5, %c0_6], %8 {strides = array<i32>} : memref<16x128xf32, #tpu.memory_space<vmem>>, vector<16x128xf32>,
    return
  }
  func.func @transform_0(%arg0: i32) -> (i32, i32) {
    %c0_i32 = arith.constant 0 : i32
    %c0_i32_0 = arith.constant 0 : i32
    return %arg0, %c0_i32 : i32, i32
  }
  func.func @transform_1(%arg0: i32) -> (i32, i32) {
    %c0_i32 = arith.constant 0 : i32
    %c0_i32_0 = arith.constant 0 : i32
    %c0_i32_1 = arith.constant 0 : i32
    return %c0_i32, %c0_i32_0 : i32, i32
  }
  func.func @transform_2(%arg0: i32) -> (i32, i32) {
    %c0_i32 = arith.constant 0 : i32
    %c0_i32_0 = arith.constant 0 : i32
    return %arg0, %c0_i32 : i32, i32
  }
}

</mosaic_0001>

<llo_original>
// kernel: tpu_custom_call.1
$region0: #{tpu_custom_call.1}
  #allocation0 [shape = 'u32[]', space=smem, size = 0x4, offset = 0x4, fixed_abs, tag = 'smem constant byte address 0x4 - core index']
  #allocation1 [shape = 'u32[144,128]{1,0:T(1,128)}', space=vmem, size = 0x12000, scoped, tag = 'internal scratch']
  %s0 = inlined_call_operand.vmem [shape: s32[16,1], index: 0, kind: input, shape index: {}]
  %s1 = inlined_call_operand.vmem [shape: f32[8,128], index: 1, kind: input, shape index: {}]
  %s2 = inlined_call_operand.hbm [shape: f32[16,128], index: 2, kind: output, shape index: {}]
  %s3 = sld [smem:[#allocation0]]
  $region18: #{tpu_custom_call.1} parent=0
    _
  %s5 = ssub.s32 1, %s3
  %s6 = scalar_select 0, %s5, %s3
  $region1: #{tpu_custom_call.1} parent=0
    #allocation2 [shape = 'u8[8192]{0}', space=vmem, size = 0x2000, scoped, tag = 'output window, operand 0, single buffered']
    #allocation3 [shape = 's32[1]{0}', space=sflag, size = 0x4, scoped, tag = 'scoped memory for tpu_custom_call.1']
    %7 = vsyncpa [#allocation3], 0
    // Predicated region
    $region2: #{tpu_custom_call.1} parent=1 // pred_check
      _
    $region3: #{tpu_custom_call.1} parent=1 // pred_check_branch
      %9 = sbr.rel (0) target = $region5
    $region4: #{tpu_custom_call.1} parent=1 // pred_region
      _
    $region5: #{tpu_custom_call.1} parent=1 // pred_fallthru
      _
    // Predicated region
    $region6: #{tpu_custom_call.1} parent=1 // pred_check
      _
    $region7: #{tpu_custom_call.1} parent=1 // pred_check_branch
      %11 = sbr.rel (0) target = $region9
    $region8: #{tpu_custom_call.1} parent=1 // pred_region
      _
    $region9: #{tpu_custom_call.1} parent=1 // pred_fallthru
      _
    %v12 = vld [vmem:[%s0] sm:$0xff]
    %v13 = vld [vmem:[%s0 + $0x8] sm:$0xff]
    %v14 = vlaneseq
    %v15 = vand.u32 %v14, 127
    %16 = vset.pattern.permute.xlu0 0
    %17 = vperm.xlu0 %16, %v12
    %v18 = vpop.permute.xlu0 %17
    %19 = vset.pattern.permute.xlu0 0
    %20 = vperm.xlu0 %19, %v13
    %v21 = vpop.permute.xlu0 %20
    %vm22 = vcmp.eq.s32.totalorder %v15, %v18
    %vm23 = vcmp.eq.s32.totalorder %v15, %v21
    %v24 = vsel %vm22, 11.313708, 0.0
    %v25 = vsel %vm23, 11.313708, 0.0
    %v26 = vld [vmem:[%s1] sm:$0xff]
    %vm27 = vcmask 64512
    %v29 = vsel %vm27, %v24, 0
    %v32 = vsel %vm27, %v25, 0
    %34 = vmatprep.subr.mxu0 0.0
    %35 = vmatpush1.msra.mxu0 %v26
    %36 = vmatprep.subr.mxu0 0.0
    %37 = vmatpush1.msra.mxu0 0.0
    %38 = vmatprep.subr.mxu0 0.0
    %39 = vmatpush1.msra.mxu0 0.0
    %40 = vmatprep.subr.mxu0 0.0
    %41 = vmatpush1.msra.mxu0 0.0
    %42 = vmatprep.subr.mxu0 0.0
    %43 = vmatpush1.msra.mxu0 0.0
    %44 = vmatprep.subr.mxu0 0.0
    %45 = vmatpush1.msra.mxu0 0.0
    %46 = vmatprep.subr.mxu0 0.0
    %47 = vmatpush1.msra.mxu0 0.0
    %48 = vmatprep.subr.mxu0 0.0
    %49 = vmatpush1.msra.mxu0 0.0
    %50 = vmatprep.subr.mxu0 0.0
    %51 = vmatpush1.msra.mxu0 0.0
    %52 = vmatprep.subr.mxu0 0.0
    %53 = vmatpush1.msra.mxu0 0.0
    %54 = vmatprep.subr.mxu0 0.0
    %55 = vmatpush1.msra.mxu0 0.0
    %56 = vmatprep.subr.mxu0 0.0
    %57 = vmatpush1.msra.mxu0 0.0
    %58 = vmatprep.subr.mxu0 0.0
    %59 = vmatpush1.msra.mxu0 0.0
    %60 = vmatprep.subr.mxu0 0.0
    %61 = vmatpush1.msra.mxu0 0.0
    %62 = vmatprep.subr.mxu0 0.0
    %63 = vmatpush1.msra.mxu0 0.0
    %64 = vmatprep.subr.mxu0 0.0
    %65 = vmatpush1.msra.mxu0 0.0
    %66 = vmatprep.subr.mxu0 0.0
    %67 = vmatpush1.msra.mxu0 0.0
    %68 = vmatprep.subr.mxu0 0.0
    %69 = vmatpush1.msra.mxu0 0.0
    %70 = vmatprep.subr.mxu0 0.0
    %71 = vmatpush1.msra.mxu0 0.0
    %72 = vmatprep.subr.mxu0 0.0
    %73 = vmatpush1.msra.mxu0 0.0
    %74 = vmatprep.subr.mxu0 0.0
    %75 = vmatpush1.msra.mxu0 0.0
    %76 = vmatprep.subr.mxu0 0.0
    %77 = vmatpush1.msra.mxu0 0.0
    %78 = vmatprep.subr.mxu0 0.0
    %79 = vmatpush1.msra.mxu0 0.0
    %80 = vmatprep.subr.mxu0 0.0
    %81 = vmatpush1.msra.mxu0 0.0
    %82 = vmatprep.subr.mxu0 0.0
    %83 = vmatpush1.msra.mxu0 0.0
    %84 = vmatprep.subr.mxu0 0.0
    %85 = vmatpush1.msra.mxu0 0.0
    %86 = vmatprep.subr.mxu0 0.0
    %87 = vmatpush1.msra.mxu0 0.0
    %88 = vmatprep.subr.mxu0 0.0
    %89 = vmatpush1.msra.mxu0 0.0
    %90 = vmatprep.subr.mxu0 0.0
    %91 = vmatpush1.msra.mxu0 0.0
    %92 = vmatprep.subr.mxu0 0.0
    %93 = vmatpush1.msra.mxu0 0.0
    %94 = vmatprep.subr.mxu0 0.0
    %95 = vmatpush1.msra.mxu0 0.0
    %96 = vmatprep.subr.mxu0 0.0
    %97 = vmatpush1.msra.mxu0 0.0
    %98 = vmatprep.mubr.f32.mxu0 0.0
    %99 = vmatmul.mubr.f32.gmra.mrb[0].mxu0 %v29
    %v100 = vpop.f32.mrb[0].mxu0
    %v101 = vadd.f32 0.0, %v100
    %v102 = vpop.f32.mrb[0].mxu0
    %103 = vmatprep.mubr.f32.mxu0 0.0
    %104 = vmatmul.mubr.f32.gmra.mrb[0].mxu0 %v32
    %v105 = vpop.f32.mrb[0].mxu0
    %v106 = vadd.f32 0.0, %v105
    %v107 = vpop.f32.mrb[0].mxu0
    %108 = vdwg.mxu0
    %109 = vst [vmem:[#allocation2] sm:$0xff] %v101
    %110 = vst [vmem:[#allocation2 + $0x8] sm:$0xff] %v106
    // Predicated region
    $region10: #{tpu_custom_call.1} parent=1 // pred_check
      _
    $region11: #{tpu_custom_call.1} parent=1 // pred_check_branch
      %112 = sbr.rel (0) target = $region13
    $region12: #{tpu_custom_call.1} parent=1 // pred_region
      %s114 = ssub.s32 256, 256
      %115 = vsyncadd [#allocation3], %s114
      %s116 = sshll.u32 [#allocation2], 4
      %s117 = int_to_ptr.vmem [resolvable:$true] %s116
      %122 = dma.vmem_to_hbm [thread:$0]  %s117, 256, %s2, [#allocation3], 128, 128, 8
    $region13: #{tpu_custom_call.1} parent=1 // pred_fallthru
      _
    // Predicated region
    $region14: #{tpu_custom_call.1} parent=1 // pred_check
      _
    $region15: #{tpu_custom_call.1} parent=1 // pred_check_branch
      %124 = sbr.rel (0) target = $region17
    $region16: #{tpu_custom_call.1} parent=1 // pred_region
      %125 = dma.done [#allocation3], 256
    $region17: #{tpu_custom_call.1} parent=1 // pred_fallthru
      _
    %126 = vsyncpa [#allocation3], 1

</llo_original>
